<compile_context>
chip_gen: v7x
topology: tpu7x:2x2x1
jax: 0.10.0
libtpu: 0.0.40
codegen_flags: <defaults>
</compile_context>

<pallas_src>
import jax
import jax.numpy as jnp
import numpy as np
from jax.experimental import pallas as pl
from jax.experimental.pallas import tpu as pltpu

EPS = 1e-8  # ChannelwiseLayerNorm epsilon (speechbrain Conv-TasNet value)


def _masknet_kernel(x_ref, w_ref, b_ref, o_ref):
    """One (batch, time-tile) block per grid step.

    x_ref : [N_in, TL]        encoder features: channels in sublanes, time in lanes
    w_ref : [C, N_out, N_in]  fused bf16 weight  ((diag(gamma) @ Wb @ Wm) per speaker, transposed)
    b_ref : [C, N_out, 1]     fused f32 bias     (beta @ Wb @ Wm, per speaker)
    o_ref : [C, N_out, TL]    relu(score), already in the final [C, M, N, L] layout
    """
    x = x_ref[...].astype(jnp.float32)                     # [N_in, TL]
    inv_n = 1.0 / x.shape[0]

    # Channelwise LayerNorm statistics in one pass (per time frame = per lane).
    s = jnp.sum(x, axis=0, keepdims=True)                  # [1, TL]
    ss = jnp.sum(x * x, axis=0, keepdims=True)             # [1, TL]
    mean = s * inv_n
    var = jnp.maximum(ss * inv_n - mean * mean, 0.0)       # unbiased=False
    z = ((x - mean) * jax.lax.rsqrt(var + EPS)).astype(jnp.bfloat16)   # [N_in, TL]

    # TODO(synk): MambaBlocksSequential source not provided; treated as identity.
    # The (cLN affine + bottleneck-conv + mask-conv) fusion below is only valid under
    # that identity assumption and must be split apart once real Mamba blocks land.

    n_spk = o_ref.shape[0]
    for c in range(n_spk):  # static Python loop; n_spk is small (typically 2)
        score = jnp.dot(w_ref[c], z, preferred_element_type=jnp.float32)   # [N_out, TL]
        o_ref[c] = jnp.maximum(score + b_ref[c], 0.0).astype(o_ref.dtype)  # relu mask


def _choose_time_tile(n_time, n_in, n_out_total, budget_bytes=8 * 1024 * 1024):
    """Largest lane-dense (multiple-of-128) time tile whose double-buffered f32
    in/out blocks stay well under the default scoped-VMEM limit on all generations
    (16 MiB v5e, 32 MiB v6e/v7x).  Prefers a tile that divides n_time (no padding)."""
    if n_time <= 128:
        return n_time
    max_tl = 128
    while (max_tl * 2 <= n_time
           and 2 * 4 * (max_tl * 2) * (n_in + n_out_total) <= budget_bytes
           and max_tl * 2 <= 2048):
        max_tl *= 2
    for tl in range(max_tl, 127, -128):
        if n_time % tl == 0:
            return tl
    return max_tl


def masknet_forward(mixture_w, gamma, beta, w_bottleneck, w_mask, n_spk):
    """mixture_w: [M, N, K]  ->  est_mask: [C, M, N, K]  (matches the PyTorch forward)."""
    M, N, K = mixture_w.shape
    n_in = N
    bot_dim = w_bottleneck.shape[1]
    cn = w_mask.shape[1]
    assert w_bottleneck.shape[0] == N and w_mask.shape[0] == bot_dim
    assert cn == n_spk * N
    n_out = N

    # ---- host-side (one-time) weight folding --------------------------------------
    # y = gamma*z + beta ; score = (y @ Wb) @ Wm  ==  z @ (diag(gamma) Wb Wm) + beta @ (Wb Wm)
    w_full = w_bottleneck.astype(jnp.float32) @ w_mask.astype(jnp.float32)        # [N, C*N]
    bias = beta.reshape(1, -1).astype(jnp.float32) @ w_full                        # [1, C*N]
    w_g = w_full * gamma.reshape(-1, 1).astype(jnp.float32)                        # scale rows by gamma
    # column index c*N + o  ->  speaker c, output channel o (matches reshape(B, L, C, N))
    w_t = jnp.transpose(w_g.reshape(n_in, n_spk, n_out), (1, 2, 0)).astype(jnp.bfloat16)  # [C, N_out, N_in]
    bias_t = bias.reshape(n_spk, n_out, 1).astype(jnp.float32)                     # [C, N_out, 1]

    # ---- time tiling ----------------------------------------------------------------
    tl = _choose_time_tile(K, n_in, cn)
    k_pad = ((K + tl - 1) // tl) * tl
    x = mixture_w
    if k_pad != K:
        # Zero-padded tail frames produce finite junk (var=0 -> z=0 -> relu(bias));
        # they are sliced off below.
        x = jnp.pad(x, ((0, 0), (0, 0), (0, k_pad - K)))

    grid = (M, k_pad // tl)

    est = pl.pallas_call(
        _masknet_kernel,
        out_shape=jax.ShapeDtypeStruct((n_spk, M, n_out, k_pad), jnp.float32),
        grid_spec=pltpu.PrefetchScalarGridSpec(
            num_scalar_prefetch=0,
            grid=grid,
            in_specs=[
                pl.BlockSpec((None, n_in, tl), lambda b, t: (b, 0, t)),        # x (streams over time)
                pl.BlockSpec((n_spk, n_out, n_in), lambda b, t: (0, 0, 0)),    # fused W (VMEM-resident)
                pl.BlockSpec((n_spk, n_out, 1), lambda b, t: (0, 0, 0)),       # fused bias (VMEM-resident)
            ],
            out_specs=pl.BlockSpec((n_spk, None, n_out, tl), lambda b, t: (0, b, 0, t)),
        ),
        compiler_params=pltpu.CompilerParams(
            dimension_semantics=("parallel", "parallel")),
    )(x, w_t, bias_t)

    if k_pad != K:
        est = est[..., :K]
    return est


def _reference_forward(mixture_w, gamma, beta, w_bottleneck, w_mask, n_spk):
    """Pure-JAX f32 reference mirroring the PyTorch forward (Mamba stack as identity)."""
    x = jnp.transpose(mixture_w, (0, 2, 1)).astype(jnp.float32)   # [M, L, N]
    mean = jnp.mean(x, axis=-1, keepdims=True)
    var = jnp.mean((x - mean) ** 2, axis=-1, keepdims=True)
    y = gamma * (x - mean) / jnp.sqrt(var + EPS) + beta
    y = y @ w_bottleneck
    score = y @ w_mask
    M, L, _ = score.shape
    N = mixture_w.shape[1]
    score = score.reshape(M, L, n_spk, N)
    score = jnp.transpose(score, (2, 0, 3, 1))                    # [C, M, N, L]
    return jax.nn.relu(score)


if __name__ == "__main__":
    # Small shapes consistent with the module:
    #   batch M = 2, enc_dim N = 16, time K = 640 (5 time tiles of 128),
    #   bot_dim = 16, n_spk = 2.
    M, N, K = 2, 16, 640
    bot_dim, n_spk = 16, 2

    key = jax.random.PRNGKey(0)
    k_x, k_wb, k_wm, k_g, k_b = jax.random.split(key, 5)

    mixture_w = jax.random.normal(k_x, (M, N, K), dtype=jnp.float32)

    # ChannelwiseLayerNorm affine (non-trivial to exercise the folding) and
    # 1x1 conv weights (bias=False).
    gamma = 1.0 + 0.1 * jax.random.normal(k_g, (N,), dtype=jnp.float32)
    beta = 0.1 * jax.random.normal(k_b, (N,), dtype=jnp.float32)
    w_bottleneck = jax.random.normal(k_wb, (N, bot_dim), dtype=jnp.float32) * (1.0 / np.sqrt(N))
    w_mask = jax.random.normal(k_wm, (bot_dim, n_spk * N), dtype=jnp.float32) * (1.0 / np.sqrt(bot_dim))

    est_mask = masknet_forward(mixture_w, gamma, beta, w_bottleneck, w_mask, n_spk)
    est_mask = jax.block_until_ready(est_mask)

    assert est_mask.shape == (n_spk, M, N, K), est_mask.shape

    ref = _reference_forward(mixture_w, gamma, beta, w_bottleneck, w_mask, n_spk)
    # bf16 matmul path vs f32 reference -> loosened tolerance.
    assert np.allclose(np.asarray(est_mask), np.asarray(ref), atol=2e-2, rtol=2e-2)

    print("KERNEL_OK")
</pallas_src>

<mosaic_0001>
module attributes {stable_mosaic.version = 11 : i64} {
  func.func @_masknet_kernel(%arg0: i32, %arg1: i32, %arg2: memref<1x16x128xf32, #tpu.memory_space<vmem>>, %arg3: memref<2x16x16xbf16, #tpu.memory_space<vmem>>, %arg4: memref<2x16x1xf32, #tpu.memory_space<vmem>>, %arg5: memref<2x1x16x128xf32, #tpu.memory_space<vmem>>) attributes {dimension_semantics = [#tpu.dimension_semantics<parallel>, #tpu.dimension_semantics<parallel>], iteration_bounds = array<i64: 2, 5>, scalar_prefetch = 0 : i64, scratch_operands = 0 : i64, tpu.core_type = #tpu.core_type<tc>, window_params = [{transform_indices = @transform_0, window_bounds = array<i64: 1, 16, 128>}, {pipeline_mode = #tpu.pipeline_mode<synchronous>, transform_indices = @transform_1, window_bounds = array<i64: 2, 16, 16>}, {pipeline_mode = #tpu.pipeline_mode<synchronous>, transform_indices = @transform_2, window_bounds = array<i64: 2, 16, 1>}, {transform_indices = @transform_3, window_bounds = array<i64: 2, 1, 16, 128>}]} {
    %c0 = arith.constant 0 : index
    %c0_0 = arith.constant 0 : index
    %c0_1 = arith.constant 0 : index
    %0 = vector.load %arg2[%c0, %c0_0, %c0_1] : memref<1x16x128xf32, #tpu.memory_space<vmem>>, vector<1x16x128xf32>
    %1 = vector.shape_cast %0 : vector<1x16x128xf32> to vector<16x128xf32>
    %cst = arith.constant dense<0.000000e+00> : vector<128xf32>
    %2 = vector.multi_reduction <add>, %1, %cst [0] : vector<16x128xf32> to vector<128xf32>
    %3 = vector.shape_cast %2 : vector<128xf32> to vector<1x128xf32>
    %4 = arith.mulf %1, %1 : vector<16x128xf32>
    %cst_2 = arith.constant dense<0.000000e+00> : vector<128xf32>
    %5 = vector.multi_reduction <add>, %4, %cst_2 [0] : vector<16x128xf32> to vector<128xf32>
    %6 = vector.shape_cast %5 : vector<128xf32> to vector<1x128xf32>
    %cst_3 = arith.constant 6.250000e-02 : f32
    %7 = vector.broadcast %cst_3 : f32 to vector<1x128xf32>
    %8 = arith.mulf %3, %7 : vector<1x128xf32>
    %cst_4 = arith.constant 6.250000e-02 : f32
    %9 = vector.broadcast %cst_4 : f32 to vector<1x128xf32>
    %10 = arith.mulf %6, %9 : vector<1x128xf32>
    %11 = arith.mulf %8, %8 : vector<1x128xf32>
    %12 = arith.subf %10, %11 : vector<1x128xf32>
    %cst_5 = arith.constant 0.000000e+00 : f32
    %13 = vector.broadcast %cst_5 : f32 to vector<1x128xf32>
    %14 = arith.maximumf %12, %13 : vector<1x128xf32>
    %15 = vector.broadcast %8 : vector<1x128xf32> to vector<16x128xf32>
    %16 = arith.subf %1, %15 : vector<16x128xf32>
    %cst_6 = arith.constant 9.99999993E-9 : f32
    %17 = vector.broadcast %cst_6 : f32 to vector<1x128xf32>
    %18 = arith.addf %14, %17 : vector<1x128xf32>
    %19 = math.rsqrt %18 : vector<1x128xf32>
    %20 = vector.broadcast %19 : vector<1x128xf32> to vector<16x128xf32>
    %21 = arith.mulf %16, %20 : vector<16x128xf32>
    %22 = arith.truncf %21 : vector<16x128xf32> to vector<16x128xbf16>
    %c0_7 = arith.constant 0 : index
    %c0_8 = arith.constant 0 : index
    %c0_9 = arith.constant 0 : index
    %23 = vector.load %arg3[%c0_7, %c0_8, %c0_9] : memref<2x16x16xbf16, #tpu.memory_space<vmem>>, vector<1x16x16xbf16>
    %24 = vector.shape_cast %23 : vector<1x16x16xbf16> to vector<16x16xbf16>
    %cst_10 = arith.constant dense<0.000000e+00> : vector<16x128xf32>
    %25 = tpu.matmul %24, %22, %cst_10 {dimension_numbers = #tpu.dot_dimension_numbers<[1], [0], [0], [1], [0, 0, 1, 1], [], []>} : vector<16x16xbf16>, vector<16x128xbf16>, vector<16x128xf32> -> vector<16x128xf32>
    %c0_11 = arith.constant 0 : index
    %c0_12 = arith.constant 0 : index
    %c0_13 = arith.constant 0 : index
    %26 = vector.load %arg4[%c0_11, %c0_12, %c0_13] : memref<2x16x1xf32, #tpu.memory_space<vmem>>, vector<1x16x1xf32>
    %27 = vector.shape_cast %26 : vector<1x16x1xf32> to vector<16x1xf32>
    %28 = vector.broadcast %27 : vector<16x1xf32> to vector<16x128xf32>
    %29 = arith.addf %25, %28 : vector<16x128xf32>
    %cst_14 = arith.constant 0.000000e+00 : f32
    %30 = vector.broadcast %cst_14 : f32 to vector<16x128xf32>
    %31 = arith.maximumf %29, %30 : vector<16x128xf32>
    %c0_15 = arith.constant 0 : index
    %c0_16 = arith.constant 0 : index
    %c0_17 = arith.constant 0 : index
    %c0_18 = arith.constant 0 : index
    %32 = vector.load %arg5[%c0_15, %c0_16, %c0_17, %c0_18] : memref<2x1x16x128xf32, #tpu.memory_space<vmem>>, vector<1x1x16x128xf32>
    %33 = vector.shape_cast %32 : vector<1x1x16x128xf32> to vector<16x128xf32>
    %34 = vector.shape_cast %31 : vector<16x128xf32> to vector<1x1x16x128xf32>
    tpu.vector_store %arg5[%c0_15, %c0_16, %c0_17, %c0_18], %34 {strides = array<i32>} : memref<2x1x16x128xf32, #tpu.memory_space<vmem>>, vector<1x1x16x128xf32>,
    %c1 = arith.constant 1 : index
    %c0_19 = arith.constant 0 : index
    %c0_20 = arith.constant 0 : index
    %35 = vector.load %arg3[%c1, %c0_19, %c0_20] : memref<2x16x16xbf16, #tpu.memory_space<vmem>>, vector<1x16x16xbf16>
    %36 = vector.shape_cast %35 : vector<1x16x16xbf16> to vector<16x16xbf16>
    %cst_21 = arith.constant dense<0.000000e+00> : vector<16x128xf32>
    %37 = tpu.matmul %36, %22, %cst_21 {dimension_numbers = #tpu.dot_dimension_numbers<[1], [0], [0], [1], [0, 0, 1, 1], [], []>} : vector<16x16xbf16>, vector<16x128xbf16>, vector<16x128xf32> -> vector<16x128xf32>
    %c1_22 = arith.constant 1 : index
    %c0_23 = arith.constant 0 : index
    %c0_24 = arith.constant 0 : index
    %38 = vector.load %arg4[%c1_22, %c0_23, %c0_24] : memref<2x16x1xf32, #tpu.memory_space<vmem>>, vector<1x16x1xf32>
    %39 = vector.shape_cast %38 : vector<1x16x1xf32> to vector<16x1xf32>
    %40 = vector.broadcast %39 : vector<16x1xf32> to vector<16x128xf32>
    %41 = arith.addf %37, %40 : vector<16x128xf32>
    %cst_25 = arith.constant 0.000000e+00 : f32
    %42 = vector.broadcast %cst_25 : f32 to vector<16x128xf32>
    %43 = arith.maximumf %41, %42 : vector<16x128xf32>
    %c1_26 = arith.constant 1 : index
    %c0_27 = arith.constant 0 : index
    %c0_28 = arith.constant 0 : index
    %c0_29 = arith.constant 0 : index
    %44 = vector.load %arg5[%c1_26, %c0_27, %c0_28, %c0_29] : memref<2x1x16x128xf32, #tpu.memory_space<vmem>>, vector<1x1x16x128xf32>
    %45 = vector.shape_cast %44 : vector<1x1x16x128xf32> to vector<16x128xf32>
    %46 = vector.shape_cast %43 : vector<16x128xf32> to vector<1x1x16x128xf32>
    tpu.vector_store %arg5[%c1_26, %c0_27, %c0_28, %c0_29], %46 {strides = array<i32>} : memref<2x1x16x128xf32, #tpu.memory_space<vmem>>, vector<1x1x16x128xf32>,
    return
  }
  func.func @transform_0(%arg0: i32, %arg1: i32) -> (i32, i32, i32) {
    %c0_i32 = arith.constant 0 : i32
    %c0_i32_0 = arith.constant 0 : i32
    return %arg0, %c0_i32, %arg1 : i32, i32, i32
  }
  func.func @transform_1(%arg0: i32, %arg1: i32) -> (i32, i32, i32) {
    %c0_i32 = arith.constant 0 : i32
    %c0_i32_0 = arith.constant 0 : i32
    %c0_i32_1 = arith.constant 0 : i32
    %c0_i32_2 = arith.constant 0 : i32
    return %c0_i32, %c0_i32_0, %c0_i32_1 : i32, i32, i32
  }
  func.func @transform_2(%arg0: i32, %arg1: i32) -> (i32, i32, i32) {
    %c0_i32 = arith.constant 0 : i32
    %c0_i32_0 = arith.constant 0 : i32
    %c0_i32_1 = arith.constant 0 : i32
    %c0_i32_2 = arith.constant 0 : i32
    return %c0_i32, %c0_i32_0, %c0_i32_1 : i32, i32, i32
  }
  func.func @transform_3(%arg0: i32, %arg1: i32) -> (i32, i32, i32, i32) {
    %c0_i32 = arith.constant 0 : i32
    %c0_i32_0 = arith.constant 0 : i32
    %c0_i32_1 = arith.constant 0 : i32
    return %c0_i32, %arg0, %c0_i32_0, %arg1 : i32, i32, i32, i32
  }
}

</mosaic_0001>

<llo_original>
// kernel: tpu_custom_call.1
$region0: #{tpu_custom_call.1}
  #allocation0 [shape = 'u32[]', space=smem, size = 0x4, offset = 0x4, fixed_abs, tag = 'smem constant byte address 0x4 - core index']
  #allocation1 [shape = 'u32[144,128]{1,0:T(1,128)}', space=vmem, size = 0x12000, scoped, tag = 'internal scratch']
  #allocation6 [shape = 's32[]', space=sflag, size = 0x4, offset = 0, fixed_abs, tag = 'sflag constant byte address 0x0 - dummy sync flag']
  %s0 = inlined_call_operand.hbm [shape: f32[2,16,640], index: 0, kind: input, shape index: {}]
  %s1 = inlined_call_operand.vmem [shape: bf16[2,16,16], index: 1, kind: input, shape index: {}]
  %s2 = inlined_call_operand.vmem [shape: f32[2,16,1], index: 2, kind: input, shape index: {}]
  %s3 = inlined_call_operand.hbm [shape: f32[2,2,16,640], index: 3, kind: output, shape index: {}]
  %s4 = sld [smem:[#allocation0]]
  $region49: #{tpu_custom_call.1} parent=0
    _
  %s6 = ssub.s32 1, %s4
  %s7 = scalar_select 0, %s6, %s4
  $region1: #{tpu_custom_call.1} parent=0
    #allocation2 [shape = 'u8[16384]{0}', space=vmem, size = 0x4000, scoped, tag = 'input window, operand 0']
    #allocation3 [shape = 's32[2]{0}', space=sflag, size = 0x8, scoped, tag = 'scoped memory for tpu_custom_call.1']
    #allocation4 [shape = 's32[2]{0}', space=sflag, size = 0x8, scoped, tag = 'scoped memory for tpu_custom_call.1']
    #allocation5 [shape = 'u8[32768]{0}', space=vmem, size = 0x8000, scoped, tag = 'output window, operand 0']
    %8 = vsyncpa [#allocation3], 0
    %s9 = scalar_lea.sflag [#allocation3], 1
    %10 = vsyncpa %s9, 0
    %11 = vsyncpa [#allocation4], 0
    %s12 = scalar_lea.sflag [#allocation4], 1
    %13 = vsyncpa %s12, 0
    loop: start=0, step=1, limit=12
    $region2: #{tpu_custom_call.1} parent=1 // loop_pre_header
      _
    $region3: #{tpu_custom_call.1} parent=1 // loop_header
      %s15 = sphi 0, %s19
      %p16 = scmp.ge.s32.totalorder %s15, 12
      %s22 = sphi 0, %s34
      %s23 = sphi 0, %s30
      %s24 = sphi 0, %s22
      %s25 = sphi 0, %s23
      %s26 = sphi 0, %s24
      %s27 = sphi 0, %s25
      %s39 = sphi 0, %s41
      %s42 = sphi 0, %s39
      %s43 = sphi 0, %s42
      %s59 = sphi 0, %s43
      %s63 = sphi 0, %s63
      %s65 = sphi 0, %s63
      %s66 = sphi 0, %s65
      %s80 = sphi 0, %s66
      %s84 = sphi 0, %s84
      %s86 = sphi 0, %s84
      %s87 = sphi 0, %s86
      %s101 = sphi 0, %s87
      %s109 = sphi 0, %s111
      %s112 = sphi 0, %s109
      %s113 = sphi 0, %s112
      %s129 = sphi 0, %s113
    $region4: #{tpu_custom_call.1} parent=1 // loop_header_branch
      %18 = sbr.rel (%p16) target = $region8
    $region5: #{tpu_custom_call.1} parent=1 // loop_body
      %s20 = ssub.s32 %s15, 1
      %s21 = ssub.s32 %s15, 2
      %s28 = sadd.s32 1, %s23
      %p29 = scmp.ge.s32.totalorder %s28, 5
      %s30 = scalar_select %p29, 0, %s28
      %s31 = sadd.s32 1, %s22
      %s32 = scalar_select %p29, %s31, %s22
      %p33 = scmp.ge.s32.totalorder %s32, 2
      %s34 = scalar_select %p33, 0, %s32
      %s35 = ssub.s32 %s22, %s34
      %s36 = ssub.s32 %s23, %s30
      %s37 = sor.u32 %s35, %s36
      %p38 = scmp.eq.s32.totalorder %s37, 0
      %s40 = sadd.s32 %s39, 1
      %s41 = scalar_select %p38, %s39, %s40
      %p44 = pneg %p38
      %p45 = scmp.eq.s32.totalorder %s15, 9
      %p46 = por %p44, %p45
      %p47 = scmp.ne.s32.totalorder %s39, %s42
      %p48 = scmp.eq.s32.totalorder %s15, 0
      %p49 = por %p47, %p48
      %p50 = scmp.ne.s32.totalorder %s39, %s42
      %p51 = scmp.eq.s32.totalorder %s20, 9
      %p52 = por %p50, %p51
      %p53 = scmp.ne.s32.totalorder %s42, %s43
      %p54 = scmp.eq.s32.totalorder %s20, 0
      %p55 = por %p53, %p54
      %p56 = scmp.ne.s32.totalorder %s42, %s43
      %p57 = scmp.eq.s32.totalorder %s21, 9
      %p58 = por %p56, %p57
      %p60 = scmp.ne.s32.totalorder %s43, %s59
      %p61 = scmp.eq.s32.totalorder %s21, 0
      %p62 = por %p60, %p61
      %s64 = sadd.s32 %s63, 1
      %p67 = scmp.eq.s32.totalorder %s15, 9
      %p68 = scmp.ne.s32.totalorder %s63, %s65
      %p69 = scmp.eq.s32.totalorder %s15, 0
      %p70 = por %p68, %p69
      %p71 = scmp.ne.s32.totalorder %s63, %s65
      %p72 = scmp.eq.s32.totalorder %s20, 9
      %p73 = por %p71, %p72
      %p74 = scmp.ne.s32.totalorder %s65, %s66
      %p75 = scmp.eq.s32.totalorder %s20, 0
      %p76 = por %p74, %p75
      %p77 = scmp.ne.s32.totalorder %s65, %s66
      %p78 = scmp.eq.s32.totalorder %s21, 9
      %p79 = por %p77, %p78
      %p81 = scmp.ne.s32.totalorder %s66, %s80
      %p82 = scmp.eq.s32.totalorder %s21, 0
      %p83 = por %p81, %p82
      %s85 = sadd.s32 %s84, 1
      %p88 = scmp.eq.s32.totalorder %s15, 9
      %p89 = scmp.ne.s32.totalorder %s84, %s86
      %p90 = scmp.eq.s32.totalorder %s15, 0
      %p91 = por %p89, %p90
      %p92 = scmp.ne.s32.totalorder %s84, %s86
      %p93 = scmp.eq.s32.totalorder %s20, 9
      %p94 = por %p92, %p93
      %p95 = scmp.ne.s32.totalorder %s86, %s87
      %p96 = scmp.eq.s32.totalorder %s20, 0
      %p97 = por %p95, %p96
      %p98 = scmp.ne.s32.totalorder %s86, %s87
      %p99 = scmp.eq.s32.totalorder %s21, 9
      %p100 = por %p98, %p99
      %p102 = scmp.ne.s32.totalorder %s87, %s101
      %p103 = scmp.eq.s32.totalorder %s21, 0
      %p104 = por %p102, %p103
      %s105 = ssub.s32 %s22, %s34
      %s106 = ssub.s32 %s23, %s30
      %s107 = sor.u32 %s105, %s106
      %p108 = scmp.eq.s32.totalorder %s107, 0
      %s110 = sadd.s32 %s109, 1
      %s111 = scalar_select %p108, %s109, %s110
      %p114 = pneg %p108
      %p115 = scmp.eq.s32.totalorder %s15, 9
      %p116 = por %p114, %p115
      %p117 = scmp.ne.s32.totalorder %s109, %s112
      %p118 = scmp.eq.s32.totalorder %s15, 0
      %p119 = por %p117, %p118
      %p120 = scmp.ne.s32.totalorder %s109, %s112
      %p121 = scmp.eq.s32.totalorder %s20, 9
      %p122 = por %p120, %p121
      %p123 = scmp.ne.s32.totalorder %s112, %s113
      %p124 = scmp.eq.s32.totalorder %s20, 0
      %p125 = por %p123, %p124
      %p126 = scmp.ne.s32.totalorder %s112, %s113
      %p127 = scmp.eq.s32.totalorder %s21, 9
      %p128 = por %p126, %p127
      %p130 = scmp.ne.s32.totalorder %s113, %s129
      %p131 = scmp.eq.s32.totalorder %s21, 0
      %p132 = por %p130, %p131
      %p133 = scmp.le.s32.totalorder 1, %s15
      %p134 = scmp.lt.s32.totalorder %s15, 11
      %p135 = pnand %p133, %p134
      %p136 = pneg %p135
      // Predicated region
      $region9: #{tpu_custom_call.1} parent=5 // pred_check
        _
      $region10: #{tpu_custom_call.1} parent=5 // pred_check_branch
        %138 = sbr.rel (%p135) target = $region12
      $region11: #{tpu_custom_call.1} parent=5 // pred_region
        %s139 = ssub.s32 %s15, 1
        // Predicated region
        $region13: #{tpu_custom_call.1} parent=11 // pred_check
          %p140 = pneg %p76
        $region14: #{tpu_custom_call.1} parent=11 // pred_check_branch
          %142 = sbr.rel (%p140) target = $region16
        $region15: #{tpu_custom_call.1} parent=11 // pred_region
          _
        $region16: #{tpu_custom_call.1} parent=11 // pred_fallthru
          _
        // Predicated region
        $region17: #{tpu_custom_call.1} parent=11 // pred_check
          %p143 = pneg %p97
        $region18: #{tpu_custom_call.1} parent=11 // pred_check_branch
          %145 = sbr.rel (%p143) target = $region20
        $region19: #{tpu_custom_call.1} parent=11 // pred_region
          _
        $region20: #{tpu_custom_call.1} parent=11 // pred_fallthru
          _
      $region12: #{tpu_custom_call.1} parent=5 // pred_fallthru
        _
      %p146 = scmp.lt.s32.totalorder %s15, 10
      // Predicated region
      $region21: #{tpu_custom_call.1} parent=5 // pred_check
        %p147 = pneg %p146
      $region22: #{tpu_custom_call.1} parent=5 // pred_check_branch
        %149 = sbr.rel (%p147) target = $region24
      $region23: #{tpu_custom_call.1} parent=5 // pred_region
        // Predicated region
        $region25: #{tpu_custom_call.1} parent=23 // pred_check
          %p150 = pneg %p49
        $region26: #{tpu_custom_call.1} parent=23 // pred_check_branch
          %152 = sbr.rel (%p150) target = $region28
        $region27: #{tpu_custom_call.1} parent=23 // pred_region
          %s153 = sand.u32 %s39, 1
          %s154 = scalar_lea.sflag [#allocation3], %s153
          %s155 = sand.u32 %s39, 1
          %s156 = smul.addr %s155, 16
          %s157 = scalar_lea.vmem [#allocation2], %s156
          %s159 = ssub.s32 256, 256
          %160 = vsyncadd %s154, %s159
          %s161 = smul.addr %s22, 10
          %s162 = sadd.s32 %s23, %s161
          %s163 = smul.addr %s162, 128
          %s164 = scalar_lea.hbm %s0, %s163
          %s165 = sshll.u32 %s157, 4
          %s166 = int_to_ptr.vmem [resolvable:$true] %s165
          %171 = dma.hbm_to_vmem [thread:$0]  %s164, 256, %s166, %s154, 640, 128, 8
        $region28: #{tpu_custom_call.1} parent=23 // pred_fallthru
          _
      $region24: #{tpu_custom_call.1} parent=5 // pred_fallthru
        _
      %p172 = scmp.le.s32.totalorder 1, %s15
      %p173 = scmp.lt.s32.totalorder %s15, 11
      %p174 = pnand %p172, %p173
      %p175 = pneg %p174
      // Predicated region
      $region29: #{tpu_custom_call.1} parent=5 // pred_check
        _
      $region30: #{tpu_custom_call.1} parent=5 // pred_check_branch
        %177 = sbr.rel (%p174) target = $region32
      $region31: #{tpu_custom_call.1} parent=5 // pred_region
        %s178 = ssub.s32 %s15, 1
        %s179 = sand.u32 %s42, 1
        %s180 = scalar_lea.sflag [#allocation3], %s179
        %s181 = sand.u32 %s42, 1
        %s182 = smul.addr %s181, 16
        %s183 = scalar_lea.vmem [#allocation2], %s182
        // Predicated region
        $region33: #{tpu_custom_call.1} parent=31 // pred_check
          %p184 = pneg %p55
        $region34: #{tpu_custom_call.1} parent=31 // pred_check_branch
          %186 = sbr.rel (%p184) target = $region36
        $region35: #{tpu_custom_call.1} parent=31 // pred_region
          %187 = dma.done %s180, 256
        $region36: #{tpu_custom_call.1} parent=31 // pred_fallthru
          _
        %s188 = sand.u32 %s42, 1
        %s189 = scalar_lea.sflag [#allocation3], %s188
        %s190 = sand.u32 %s42, 1
        %s191 = smul.addr %s190, 16
        %s192 = scalar_lea.vmem [#allocation2], %s191
        %p193 = pneg %p55
        %p194 = pneg %p52
        %p195 = pneg %p76
        %p196 = pneg %p73
        %p197 = pneg %p97
        %p198 = pneg %p94
        %p199 = pneg %p125
        %p200 = pneg %p122
        %s201 = sand.u32 %s112, 1
        %s202 = scalar_lea.sflag [#allocation4], %s201
        %s203 = sand.u32 %s112, 1
        %s204 = smul.addr %s203, 32
        %s205 = scalar_lea.vmem [#allocation5], %s204
        %v207 = vld [vmem:[%s183] sm:$0xff]
        %v208 = vld [vmem:[%s183 + $0x8] sm:$0xff]
        %v209 = vadd.f32 %v207, %v208
        %v210 = vrot.slane %v209, 4
        %v211 = vadd.f32 %v209, %v210
        %v212 = vrot.slane %v211, 2
        %v213 = vadd.f32 %v211, %v212
        %v214 = vrot.slane %v213, 1
        %v215 = vadd.f32 %v213, %v214
        %v216 = vmul.f32 %v207, %v207
        %v217 = vmul.f32 %v208, %v208
        %v218 = vadd.f32 %v216, %v217
        %v219 = vrot.slane %v218, 4
        %v220 = vadd.f32 %v218, %v219
        %v221 = vrot.slane %v220, 2
        %v222 = vadd.f32 %v220, %v221
        %v223 = vrot.slane %v222, 1
        %v224 = vadd.f32 %v222, %v223
        %v225 = vmul.f32 %v215, 0.0625
        %v226 = vmul.f32 %v224, 0.0625
        %v227 = vmul.f32 %v225, %v225
        %v228 = vsub.f32 %v226, %v227
        %v229 = vmax.f32 %v228, 0.0
        %v230 = vsub.f32 %v207, %v225
        %v231 = vsub.f32 %v208, %v225
        %v232 = vadd.f32 %v229, 1e-08
        %v233 = vrsqrt.pop %v232
        %v234 = vmul.f32 %v230, %v233
        %v235 = vmul.f32 %v231, %v233
        %v236 = vpack.c.bf16 %v235, %v234
        %v237 = vld [vmem:[%s1] sm:$0xf]
        %v238 = vld [vmem:[%s1 + $0x4] sm:$0xf]
        %v239 = vld [vmem:[%s2] sm:$0xff]
        %v240 = vld [vmem:[%s2 + $0x8] sm:$0xff]
        %242 = vset.pattern.permute.xlu0 0
        %243 = vperm.xlu0 %242, %v239
        %v244 = vpop.permute.xlu0 %243
        %247 = vset.pattern.permute.xlu0 0
        %248 = vperm.xlu0 %247, %v240
        %v249 = vpop.permute.xlu0 %248
        %v253 = vunpack.c.l.b16 %v237
        %v254 = vunpack.c.l.b16 %v238
        %v255 = vpack.c.b16 %v254, %v253
        %vm256 = vcmask 130048
        %v258 = vsel %vm256, %v255, 0
        %260 = vmatprep.subr.bf16.mxu0 0
        %261 = vmatpush1.bf16.msra.mxu0 %v236
        %262 = vmatprep.subr.bf16.mxu0 0
        %263 = vmatpush1.bf16.msra.mxu0 0
        %264 = vmatprep.subr.bf16.mxu0 0
        %265 = vmatpush1.bf16.msra.mxu0 0
        %266 = vmatprep.subr.bf16.mxu0 0
        %267 = vmatpush1.bf16.msra.mxu0 0
        %268 = vmatprep.subr.bf16.mxu0 0
        %269 = vmatpush1.bf16.msra.mxu0 0
        %270 = vmatprep.subr.bf16.mxu0 0
        %271 = vmatpush1.bf16.msra.mxu0 0
        %272 = vmatprep.subr.bf16.mxu0 0
        %273 = vmatpush1.bf16.msra.mxu0 0
        %274 = vmatprep.subr.bf16.mxu0 0
        %275 = vmatpush1.bf16.msra.mxu0 0
        %276 = vmatprep.subr.bf16.mxu0 0
        %277 = vmatpush1.bf16.msra.mxu0 0
        %278 = vmatprep.subr.bf16.mxu0 0
        %279 = vmatpush1.bf16.msra.mxu0 0
        %280 = vmatprep.subr.bf16.mxu0 0
        %281 = vmatpush1.bf16.msra.mxu0 0
        %282 = vmatprep.subr.bf16.mxu0 0
        %283 = vmatpush1.bf16.msra.mxu0 0
        %284 = vmatprep.subr.bf16.mxu0 0
        %285 = vmatpush1.bf16.msra.mxu0 0
        %286 = vmatprep.subr.bf16.mxu0 0
        %287 = vmatpush1.bf16.msra.mxu0 0
        %288 = vmatprep.subr.bf16.mxu0 0
        %289 = vmatpush1.bf16.msra.mxu0 0
        %290 = vmatprep.subr.bf16.mxu0 0
        %291 = vmatpush1.bf16.msra.mxu0 0
        %292 = vmatprep.mubr.bf16.mxu0 0
        %293 = vmatmul.mubr.bf16.gmra.mrb[0].mxu0 %v258
        %v294 = vpop.f32.mrb[0].mxu0
        %v295 = vadd.f32 %v244, %v294
        %v296 = vpop.f32.mrb[0].mxu0
        %v297 = vpop.f32.mrb[0].mxu0
        %v298 = vadd.f32 %v249, %v297
        %v299 = vpop.f32.mrb[0].mxu0
        %300 = vdwg.mxu0
        %v301 = vmax.f32 %v295, 0.0
        %v302 = vmax.f32 %v298, 0.0
        %303 = vst [vmem:[%s205] sm:$0xff] %v301
        %304 = vst [vmem:[%s205 + $0x8] sm:$0xff] %v302
        %s305 = scalar_lea.vmem %s1, 8
        %v306 = vld [vmem:[%s305] sm:$0xf]
        %v307 = vld [vmem:[%s305 + $0x4] sm:$0xf]
        %s308 = scalar_lea.vmem %s2, 16
        %v309 = vld [vmem:[%s308] sm:$0xff]
        %v310 = vld [vmem:[%s308 + $0x8] sm:$0xff]
        %312 = vset.pattern.permute.xlu0 0
        %313 = vperm.xlu0 %312, %v309
        %v314 = vpop.permute.xlu0 %313
        %317 = vset.pattern.permute.xlu0 0
        %318 = vperm.xlu0 %317, %v310
        %v319 = vpop.permute.xlu0 %318
        %v323 = vunpack.c.l.b16 %v306
        %v324 = vunpack.c.l.b16 %v307
        %v325 = vpack.c.b16 %v324, %v323
        %v327 = vsel %vm256, %v325, 0
        %329 = vmatprep.subr.bf16.mxu0 0
        %330 = vmatpush1.bf16.msra.mxu0 %v236
        %331 = vmatprep.subr.bf16.mxu0 0
        %332 = vmatpush1.bf16.msra.mxu0 0
        %333 = vmatprep.subr.bf16.mxu0 0
        %334 = vmatpush1.bf16.msra.mxu0 0
        %335 = vmatprep.subr.bf16.mxu0 0
        %336 = vmatpush1.bf16.msra.mxu0 0
        %337 = vmatprep.subr.bf16.mxu0 0
        %338 = vmatpush1.bf16.msra.mxu0 0
        %339 = vmatprep.subr.bf16.mxu0 0
        %340 = vmatpush1.bf16.msra.mxu0 0
        %341 = vmatprep.subr.bf16.mxu0 0
        %342 = vmatpush1.bf16.msra.mxu0 0
        %343 = vmatprep.subr.bf16.mxu0 0
        %344 = vmatpush1.bf16.msra.mxu0 0
        %345 = vmatprep.subr.bf16.mxu0 0
        %346 = vmatpush1.bf16.msra.mxu0 0
        %347 = vmatprep.subr.bf16.mxu0 0
        %348 = vmatpush1.bf16.msra.mxu0 0
        %349 = vmatprep.subr.bf16.mxu0 0
        %350 = vmatpush1.bf16.msra.mxu0 0
        %351 = vmatprep.subr.bf16.mxu0 0
        %352 = vmatpush1.bf16.msra.mxu0 0
        %353 = vmatprep.subr.bf16.mxu0 0
        %354 = vmatpush1.bf16.msra.mxu0 0
        %355 = vmatprep.subr.bf16.mxu0 0
        %356 = vmatpush1.bf16.msra.mxu0 0
        %357 = vmatprep.subr.bf16.mxu0 0
        %358 = vmatpush1.bf16.msra.mxu0 0
        %359 = vmatprep.subr.bf16.mxu0 0
        %360 = vmatpush1.bf16.msra.mxu0 0
        %361 = vmatprep.mubr.bf16.mxu0 0
        %362 = vmatmul.mubr.bf16.gmra.mrb[0].mxu0 %v327
        %v363 = vpop.f32.mrb[0].mxu0
        %v364 = vadd.f32 %v314, %v363
        %v365 = vpop.f32.mrb[0].mxu0
        %v366 = vpop.f32.mrb[0].mxu0
        %v367 = vadd.f32 %v319, %v366
        %v368 = vpop.f32.mrb[0].mxu0
        %369 = vdwg.mxu0
        %v370 = vmax.f32 %v364, 0.0
        %v371 = vmax.f32 %v367, 0.0
        %s372 = scalar_lea.vmem %s205, 16 [#allocation5]
        %373 = vst [vmem:[%s372] sm:$0xff] %v370
        %374 = vst [vmem:[%s372 + $0x8] sm:$0xff] %v371
        %s375 = sand.u32 %s112, 1
        %s376 = scalar_lea.sflag [#allocation4], %s375
        %s377 = sand.u32 %s112, 1
        %s378 = smul.addr %s377, 32
        %s379 = scalar_lea.vmem [#allocation5], %s378
        // Predicated region
        $region37: #{tpu_custom_call.1} parent=31 // pred_check
          %p380 = pneg %p122
        $region38: #{tpu_custom_call.1} parent=31 // pred_check_branch
          %382 = sbr.rel (%p380) target = $region40
        $region39: #{tpu_custom_call.1} parent=31 // pred_region
          #allocation7 [shape = 'u32[6]{0}', space=smem, size = 0x18, scoped, tag = 'DMA stride descriptor']
          %s384 = ssub.s32 512, 512
          %385 = vsyncadd %s376, %s384
          %s386 = smul.addr %s24, 10
          %s387 = sadd.s32 %s25, %s386
          %s388 = smul.addr %s387, 128
          %s389 = scalar_lea.hbm %s3, %s388
          %s391 = sshll.u32 1, 14
          %s392 = sxor.u32 4294967295, %s391
          %s395 = sshll.u32 7, 18
          %s396 = sxor.u32 4294967295, %s395
          %s397 = sand.u32 0, %s396
          %s399 = sor.u32 %s397, 0
          %s401 = sshll.u32 3, 24
          %s402 = sxor.u32 4294967295, %s401
          %s403 = sand.u32 %s399, %s402
          %s405 = sor.u32 %s403, 0
          %s406 = sshll.u32 %s379, 4
          %s407 = int_to_ptr.vmem [resolvable:$true] %s406
          %413 = sst [smem:[#allocation7]] 256
          %s414 = scalar_lea.smem [#allocation7], 1
          %415 = sst [smem:[%s414]] 2560
          %s416 = scalar_lea.smem [#allocation7], 2
          %417 = sst [smem:[%s416]] 2
          %s418 = scalar_lea.smem [#allocation7], 3
          %419 = sst [smem:[%s418]] 128
          %s420 = scalar_lea.smem [#allocation7], 4
          %421 = sst [smem:[%s420]] 640
          %s422 = scalar_lea.smem [#allocation7], 5
          %423 = sst [smem:[%s422]] 8
          %425 = dma.general %s407, 512, %s389, %s376, [#allocation6], [#allocation7], %s405, 0
        $region40: #{tpu_custom_call.1} parent=31 // pred_fallthru
          _
      $region32: #{tpu_custom_call.1} parent=5 // pred_fallthru
        _
      %p426 = scmp.le.s32.totalorder 2, %s15
      // Predicated region
      $region41: #{tpu_custom_call.1} parent=5 // pred_check
        %p427 = pneg %p426
      $region42: #{tpu_custom_call.1} parent=5 // pred_check_branch
        %429 = sbr.rel (%p427) target = $region44
      $region43: #{tpu_custom_call.1} parent=5 // pred_region
        %s430 = ssub.s32 %s15, 2
        // Predicated region
        $region45: #{tpu_custom_call.1} parent=43 // pred_check
          %p431 = pneg %p128
        $region46: #{tpu_custom_call.1} parent=43 // pred_check_branch
          %433 = sbr.rel (%p431) target = $region48
        $region47: #{tpu_custom_call.1} parent=43 // pred_region
          %s434 = sand.u32 %s113, 1
          %s435 = scalar_lea.sflag [#allocation4], %s434
          %s436 = sand.u32 %s113, 1
          %s437 = smul.addr %s436, 32
          %s438 = scalar_lea.vmem [#allocation5], %s437
          %439 = dma.done %s435, 512
        $region48: #{tpu_custom_call.1} parent=43 // pred_fallthru
          _
      $region44: #{tpu_custom_call.1} parent=5 // pred_fallthru
        _
    $region6: #{tpu_custom_call.1} parent=1 // loop_footer
      %s19 = sadd.s32 1, %s15
    $region7: #{tpu_custom_call.1} parent=1 // loop_footer_branch
      %14 = sbr.rel target = $region3
    $region8: #{tpu_custom_call.1} parent=1 // loop_exit
      _
    %440 = vsyncpa [#allocation3], 1
    %s441 = scalar_lea.sflag [#allocation3], 1
    %442 = vsyncpa %s441, 1
    %443 = vsyncpa [#allocation4], 1
    %s444 = scalar_lea.sflag [#allocation4], 1
    %445 = vsyncpa %s444, 1

</llo_original>
